<compile_context>
chip_gen: v7x
topology: tpu7x:2x2x1
jax: 0.10.0
libtpu: 0.0.40
codegen_flags: <defaults>
</compile_context>

<pallas_src>
import jax
import jax.numpy as jnp
from jax import lax
from jax.experimental import pallas as pl
from jax.experimental.pallas import tpu as pltpu

_LANES = 128


def _packing(itemsize: int) -> int:
    """Sublane packing factor for sub-32-bit dtypes."""
    if itemsize >= 4:
        return 1
    return 4 // itemsize  # 2 for bf16/f16, 4 for int8/fp8


def _largest_divisor(n: int) -> int:
    for c in (64, 32, 16, 8, 4, 2, 1):
        if n % c == 0:
            return c
    return 1


def _num_tensorcores() -> int:
    """2 on v7x (two TensorCores per chip addressable via a parallel grid axis)."""
    try:
        kind = jax.devices()[0].device_kind.lower()
    except Exception:
        return 1
    return 2 if ("v7" in kind or "7x" in kind) else 1


def _make_loss_kernel(*, inv_n: float, rows: int, tile_rows: int, acc_rows: int,
                      steps_per_part: int, ragged: bool):
    """Kernel closed over static sizes (true element/row counts, tiling)."""
    n_fold = tile_rows // acc_rows

    def kernel(p_ref, t_ref, o_ref, acc_ref):
        c = pl.program_id(0)   # TensorCore partition (parallel)
        i = pl.program_id(1)   # reduction step within the partition (arbitrary)

        @pl.when(i == 0)
        def _():
            acc_ref[...] = jnp.zeros_like(acc_ref)

        # Cast inside the kernel: free VPU work under a memory-bound loop.
        d = p_ref[...].astype(jnp.float32) - t_ref[...].astype(jnp.float32)
        e = jnp.abs(d)
        contrib = e + d * d            # |d| + d^2 in one accumulate stream

        def accumulate(x):
            # Wide accumulator: n_fold independent chains per vreg position.
            acc_ref[...] += x.reshape(n_fold, acc_rows, _LANES).sum(axis=0)

        if ragged:
            # Only the block(s) that overlap the boundary pay for the mask.
            valid_rows = rows - (c * steps_per_part + i) * tile_rows

            @pl.when(valid_rows >= tile_rows)
            def _():
                accumulate(contrib)

            @pl.when(valid_rows < tile_rows)
            def _():
                row_idx = lax.broadcasted_iota(jnp.int32, (tile_rows, _LANES), 0)
                accumulate(jnp.where(row_idx < valid_rows, contrib, 0.0))
        else:
            accumulate(contrib)

        @pl.when(i == steps_per_part - 1)
        def _():
            part = acc_ref[...] * inv_n
            if acc_rows % 8 == 0:
                # Fold the wide accumulator to one (8,128) slab; the final
                # (tiny) cross-lane reduce happens in the wrapper.
                o_ref[...] = part.reshape(acc_rows // 8, 8, _LANES).sum(axis=0)
            else:
                # Tiny-input case (acc_rows in {1,2,4}).
                o_ref[...] = jnp.zeros_like(o_ref)
                o_ref[0:acc_rows, :] = part

    return kernel


def combined_loss(preds, targets, *, block_bytes: int = 4 * 1024 * 1024):
    """mean(|preds - targets|) + mean((preds - targets)**2), scalar f32."""
    assert preds.shape == targets.shape, "preds/targets must match in shape"
    total_n = preds.size
    assert total_n > 0

    # Flatten in native dtype (free reshapes, no wrapper-side f32 copies).
    p = preds.reshape(-1)
    t = targets.reshape(-1)

    itemsize = max(jnp.dtype(p.dtype).itemsize, jnp.dtype(t.dtype).itemsize)
    packing = _packing(itemsize)
    row_align = 8 * packing          # native sublane group for this dtype
    elem_align = _LANES * packing    # rows land on packed sublane boundaries

    # Only pad when misaligned; aligned sizes (the common case) copy nothing.
    pad = (-total_n) % elem_align
    if pad:
        # TODO(synk): replace with a manual pl.ANY + make_async_copy tail DMA to
        # avoid this full-array HBM copy for misaligned element counts.
        p = jnp.pad(p, (0, pad))
        t = jnp.pad(t, (0, pad))
    padded_n = total_n + pad

    rows = padded_n // _LANES
    p2 = p.reshape(rows, _LANES)     # free, lane-dense
    t2 = t.reshape(rows, _LANES)

    # ~4 MiB per input block -> 16 MiB double-buffered across 2 inputs, well
    # under the explicit 32 MiB scoped-VMEM limit on every generation.
    default_tile_rows = max(
        row_align, (block_bytes // (_LANES * itemsize)) // row_align * row_align)
    tile_rows = min(default_tile_rows, rows)   # if < rows it's row_align-aligned;
                                               # else it equals the full dim.

    num_blocks = -(-rows // tile_rows)
    num_parts = min(_num_tensorcores(), num_blocks)   # 2 only on v7x
    steps_per_part = -(-num_blocks // num_parts)

    clamp = num_parts * steps_per_part > num_blocks          # fully-OOB tail blocks
    ragged = num_parts * steps_per_part * tile_rows != rows  # any masking needed
    acc_rows = _largest_divisor(tile_rows)                   # 64 for large tiles
    inv_n = 1.0 / float(total_n)

    def row_block(c, i):
        idx = c * steps_per_part + i
        if clamp:
            # Duplicate (fully masked) blocks re-read the last valid block so the
            # DMA never walks past the array; the kernel mask zeroes them out.
            idx = jnp.minimum(idx, num_blocks - 1)
        return (idx, 0)

    kernel = _make_loss_kernel(inv_n=inv_n, rows=rows, tile_rows=tile_rows,
                               acc_rows=acc_rows, steps_per_part=steps_per_part,
                               ragged=ragged)

    out = pl.pallas_call(
        kernel,
        out_shape=jax.ShapeDtypeStruct((num_parts * 8, _LANES), jnp.float32),
        grid_spec=pltpu.PrefetchScalarGridSpec(
            num_scalar_prefetch=0,
            grid=(num_parts, steps_per_part),
            in_specs=[
                pl.BlockSpec((tile_rows, _LANES), row_block),
                pl.BlockSpec((tile_rows, _LANES), row_block),
            ],
            out_specs=pl.BlockSpec((8, _LANES), lambda c, i: (c, 0)),
            scratch_shapes=[pltpu.VMEM((acc_rows, _LANES), jnp.float32)],
        ),
        compiler_params=pltpu.CompilerParams(
            dimension_semantics=("parallel", "arbitrary"),
            vmem_limit_bytes=32 * 1024 * 1024,
        ),
        cost_estimate=pl.CostEstimate(
            flops=5 * total_n,
            transcendentals=0,
            bytes_accessed=(p2.size * p2.dtype.itemsize
                            + t2.size * t2.dtype.itemsize
                            + num_parts * 8 * _LANES * 4),
        ),
    )(p2, t2)

    # Sum of the per-core partial slabs (tiny: num_parts*8*128 f32).
    return jnp.sum(out)


if __name__ == "__main__":
    key = jax.random.PRNGKey(0)
    k1, k2 = jax.random.split(key)

    # Small shapes consistent with a generic (B, C, H, W) prediction tensor.
    preds = jax.random.normal(k1, (2, 4, 16, 16), dtype=jnp.float32)
    targets = jax.random.normal(k2, (2, 4, 16, 16), dtype=jnp.float32)

    loss = combined_loss(preds, targets)
    loss = jax.block_until_ready(loss)

    # Reference: L1Loss('mean') + MSELoss('mean') in plain JAX.
    ref = jnp.mean(jnp.abs(preds - targets)) + jnp.mean((preds - targets) ** 2)
    assert jnp.allclose(loss, ref, rtol=1e-5, atol=1e-5), (loss, ref)

    print("KERNEL_OK")
</pallas_src>

<mosaic_0001>
module attributes {stable_mosaic.version = 11 : i64} {
  func.func @kernel(%arg0: i32, %arg1: i32, %arg2: memref<16x128xf32, #tpu.memory_space<vmem>>, %arg3: memref<16x128xf32, #tpu.memory_space<vmem>>, %arg4: memref<8x128xf32, #tpu.memory_space<vmem>>, %arg5: memref<16x128xf32, #tpu.memory_space<vmem>>) attributes {dimension_semantics = [#tpu.dimension_semantics<parallel>, #tpu.dimension_semantics<arbitrary>], iteration_bounds = array<i64: 1, 1>, scalar_prefetch = 0 : i64, scratch_operands = 1 : i64, tpu.core_type = #tpu.core_type<tc>, window_params = [{transform_indices = @transform_0, window_bounds = array<i64: 16, 128>}, {transform_indices = @transform_1, window_bounds = array<i64: 16, 128>}, {transform_indices = @transform_2, window_bounds = array<i64: 8, 128>}]} {
    %c0_i32 = arith.constant 0 : i32
    %0 = arith.cmpi eq, %arg1, %c0_i32 : i32
    %1 = arith.extui %0 : i1 to i32
    %c0_i32_0 = arith.constant 0 : i32
    %2 = arith.cmpi ne, %1, %c0_i32_0 : i32
    scf.if %2 {
      %cst_10 = arith.constant 0.000000e+00 : f32
      %17 = vector.broadcast %cst_10 : f32 to vector<16x128xf32>
      %c0_11 = arith.constant 0 : index
      %c0_12 = arith.constant 0 : index
      %18 = vector.load %arg5[%c0_11, %c0_12] : memref<16x128xf32, #tpu.memory_space<vmem>>, vector<16x128xf32>
      tpu.vector_store %arg5[%c0_11, %c0_12], %17 {strides = array<i32>} : memref<16x128xf32, #tpu.memory_space<vmem>>, vector<16x128xf32>,
    } else {
    }
    %c0 = arith.constant 0 : index
    %c0_1 = arith.constant 0 : index
    %3 = vector.load %arg2[%c0, %c0_1] : memref<16x128xf32, #tpu.memory_space<vmem>>, vector<16x128xf32>
    %c0_2 = arith.constant 0 : index
    %c0_3 = arith.constant 0 : index
    %4 = vector.load %arg3[%c0_2, %c0_3] : memref<16x128xf32, #tpu.memory_space<vmem>>, vector<16x128xf32>
    %5 = arith.subf %3, %4 : vector<16x128xf32>
    %6 = math.absf %5 : vector<16x128xf32>
    %7 = arith.mulf %5, %5 : vector<16x128xf32>
    %8 = arith.addf %6, %7 : vector<16x128xf32>
    %c0_4 = arith.constant 0 : index
    %c0_5 = arith.constant 0 : index
    %9 = vector.load %arg5[%c0_4, %c0_5] : memref<16x128xf32, #tpu.memory_space<vmem>>, vector<16x128xf32>
    %10 = vector.shape_cast %8 : vector<16x128xf32> to vector<1x16x128xf32>
    %cst = arith.constant dense<0.000000e+00> : vector<16x128xf32>
    %11 = vector.multi_reduction <add>, %10, %cst [0] : vector<1x16x128xf32> to vector<16x128xf32>
    %12 = arith.addf %9, %11 : vector<16x128xf32>
    %c0_6 = arith.constant 0 : index
    %c0_7 = arith.constant 0 : index
    %13 = vector.load %arg5[%c0_6, %c0_7] : memref<16x128xf32, #tpu.memory_space<vmem>>, vector<16x128xf32>
    tpu.vector_store %arg5[%c0_6, %c0_7], %12 {strides = array<i32>} : memref<16x128xf32, #tpu.memory_space<vmem>>, vector<16x128xf32>,
    %c0_i32_8 = arith.constant 0 : i32
    %14 = arith.cmpi eq, %arg1, %c0_i32_8 : i32
    %15 = arith.extui %14 : i1 to i32
    %c0_i32_9 = arith.constant 0 : i32
    %16 = arith.cmpi ne, %15, %c0_i32_9 : i32
    scf.if %16 {
      %c0_10 = arith.constant 0 : index
      %c0_11 = arith.constant 0 : index
      %17 = vector.load %arg5[%c0_10, %c0_11] : memref<16x128xf32, #tpu.memory_space<vmem>>, vector<16x128xf32>
      %cst_12 = arith.constant 4.8828125E-4 : f32
      %18 = vector.broadcast %cst_12 : f32 to vector<16x128xf32>
      %19 = arith.mulf %17, %18 : vector<16x128xf32>
      %20 = vector.shape_cast %19 : vector<16x128xf32> to vector<2x8x128xf32>
      %cst_13 = arith.constant dense<0.000000e+00> : vector<8x128xf32>
      %21 = vector.multi_reduction <add>, %20, %cst_13 [0] : vector<2x8x128xf32> to vector<8x128xf32>
      %c0_14 = arith.constant 0 : index
      %c0_15 = arith.constant 0 : index
      %22 = vector.load %arg4[%c0_14, %c0_15] : memref<8x128xf32, #tpu.memory_space<vmem>>, vector<8x128xf32>
      tpu.vector_store %arg4[%c0_14, %c0_15], %21 {strides = array<i32>} : memref<8x128xf32, #tpu.memory_space<vmem>>, vector<8x128xf32>,
    } else {
    }
    return
  }
  func.func @transform_0(%arg0: i32, %arg1: i32) -> (i32, i32) {
    %c1_i32 = arith.constant 1 : i32
    %0 = arith.muli %arg0, %c1_i32 : i32
    %1 = arith.addi %0, %arg1 : i32
    %c0_i32 = arith.constant 0 : i32
    %c0_i32_0 = arith.constant 0 : i32
    return %1, %c0_i32 : i32, i32
  }
  func.func @transform_1(%arg0: i32, %arg1: i32) -> (i32, i32) {
    %c1_i32 = arith.constant 1 : i32
    %0 = arith.muli %arg0, %c1_i32 : i32
    %1 = arith.addi %0, %arg1 : i32
    %c0_i32 = arith.constant 0 : i32
    %c0_i32_0 = arith.constant 0 : i32
    return %1, %c0_i32 : i32, i32
  }
  func.func @transform_2(%arg0: i32, %arg1: i32) -> (i32, i32) {
    %c0_i32 = arith.constant 0 : i32
    %c0_i32_0 = arith.constant 0 : i32
    return %arg0, %c0_i32 : i32, i32
  }
}

</mosaic_0001>

<llo_original>
// kernel: tpu_custom_call.1
$region0: #{tpu_custom_call.1}
  #allocation0 [shape = 'u32[]', space=smem, size = 0x4, offset = 0x4, fixed_abs, tag = 'smem constant byte address 0x4 - core index']
  #allocation1 [shape = 'u32[144,128]{1,0:T(1,128)}', space=vmem, size = 0x12000, scoped, tag = 'internal scratch']
  #allocation2 [shape = 'f32[16,128]{1,0:T(8,128)}', space=vmem, size = 0x2000, scoped, tag = 'scratch operand']
  %s0 = inlined_call_operand.hbm [shape: f32[16,128], index: 0, kind: input, shape index: {}]
  %s1 = inlined_call_operand.hbm [shape: f32[16,128], index: 1, kind: input, shape index: {}]
  %s2 = inlined_call_operand.hbm [shape: f32[8,128], index: 2, kind: output, shape index: {}]
  %s3 = sld [smem:[#allocation0]]
  $region34: #{tpu_custom_call.1} parent=0
    _
  %s5 = ssub.s32 1, %s3
  %s6 = scalar_select 0, %s5, %s3
  $region1: #{tpu_custom_call.1} parent=0
    #allocation3 [shape = 'u8[8192]{0}', space=vmem, size = 0x2000, scoped, tag = 'input window, operand 0, single buffered']
    #allocation4 [shape = 's32[1]{0}', space=sflag, size = 0x4, scoped, tag = 'scoped memory for tpu_custom_call.1']
    #allocation5 [shape = 's32[1]{0}', space=sflag, size = 0x4, scoped, tag = 'scoped memory for tpu_custom_call.1']
    #allocation6 [shape = 'u8[8192]{0}', space=vmem, size = 0x2000, scoped, tag = 'input window, operand 1, single buffered']
    #allocation7 [shape = 's32[1]{0}', space=sflag, size = 0x4, scoped, tag = 'scoped memory for tpu_custom_call.1']
    #allocation8 [shape = 'u8[4096]{0}', space=vmem, size = 0x1000, scoped, tag = 'output window, operand 0, single buffered']
    %7 = vsyncpa [#allocation4], 0
    %8 = vsyncpa [#allocation7], 0
    %9 = vsyncpa [#allocation5], 0
    // Predicated region
    $region2: #{tpu_custom_call.1} parent=1 // pred_check
      _
    $region3: #{tpu_custom_call.1} parent=1 // pred_check_branch
      %11 = sbr.rel (0) target = $region5
    $region4: #{tpu_custom_call.1} parent=1 // pred_region
      %s12 = sadd.s32 0, 0
      %s13 = smul.u32 2, %s12
      %s15 = ssub.s32 256, 256
      %16 = vsyncadd [#allocation4], %s15
      %s17 = smul.addr %s13, 128
      %s18 = scalar_lea.hbm %s0, %s17
      %s19 = sshll.u32 [#allocation3], 4
      %s20 = int_to_ptr.vmem [resolvable:$true] %s19
      %25 = dma.hbm_to_vmem [thread:$0]  %s18, 256, %s20, [#allocation4], 128, 128, 8
    $region5: #{tpu_custom_call.1} parent=1 // pred_fallthru
      _
    // Predicated region
    $region6: #{tpu_custom_call.1} parent=1 // pred_check
      _
    $region7: #{tpu_custom_call.1} parent=1 // pred_check_branch
      %27 = sbr.rel (0) target = $region9
    $region8: #{tpu_custom_call.1} parent=1 // pred_region
      %s28 = sadd.s32 0, 0
      %s29 = smul.u32 2, %s28
      %s31 = ssub.s32 256, 256
      %32 = vsyncadd [#allocation7], %s31
      %s33 = smul.addr %s29, 128
      %s34 = scalar_lea.hbm %s1, %s33
      %s35 = sshll.u32 [#allocation6], 4
      %s36 = int_to_ptr.vmem [resolvable:$true] %s35
      %41 = dma.hbm_to_vmem [thread:$0]  %s34, 256, %s36, [#allocation7], 128, 128, 8
    $region9: #{tpu_custom_call.1} parent=1 // pred_fallthru
      _
    // Predicated region
    $region10: #{tpu_custom_call.1} parent=1 // pred_check
      _
    $region11: #{tpu_custom_call.1} parent=1 // pred_check_branch
      %43 = sbr.rel (0) target = $region13
    $region12: #{tpu_custom_call.1} parent=1 // pred_region
      %44 = dma.done [#allocation4], 256
    $region13: #{tpu_custom_call.1} parent=1 // pred_fallthru
      _
    // Predicated region
    $region14: #{tpu_custom_call.1} parent=1 // pred_check
      _
    $region15: #{tpu_custom_call.1} parent=1 // pred_check_branch
      %46 = sbr.rel (0) target = $region17
    $region16: #{tpu_custom_call.1} parent=1 // pred_region
      %47 = dma.done [#allocation7], 256
    $region17: #{tpu_custom_call.1} parent=1 // pred_fallthru
      _
    %s48 = sadd.s32 0, 0
    %s49 = smul.u32 2, %s48
    %s50 = sadd.s32 0, 0
    %s51 = smul.u32 2, %s50
    %p52 = scmp.eq.s32.totalorder 0, 0
    // Predicated region
    $region18: #{tpu_custom_call.1} parent=1 // pred_check
      %p53 = pneg %p52
    $region19: #{tpu_custom_call.1} parent=1 // pred_check_branch
      %55 = sbr.rel (%p53) target = $region21
    $region20: #{tpu_custom_call.1} parent=1 // pred_region
      %56 = vst [vmem:[#allocation2] sm:$0xff] 0.0
      %57 = vst [vmem:[#allocation2 + $0x8] sm:$0xff] 0.0
    $region21: #{tpu_custom_call.1} parent=1 // pred_fallthru
      _
    %v58 = vld [vmem:[#allocation3] sm:$0xff]
    %v59 = vld [vmem:[#allocation3 + $0x8] sm:$0xff]
    %v60 = vld [vmem:[#allocation6] sm:$0xff]
    %v61 = vld [vmem:[#allocation6 + $0x8] sm:$0xff]
    %v62 = vsub.f32 %v58, %v60
    %v63 = vsub.f32 %v59, %v61
    %v64 = vand.u32 2147483647, %v62
    %v65 = vand.u32 2147483647, %v63
    %v66 = vmul.f32 %v62, %v62
    %v67 = vmul.f32 %v63, %v63
    %v68 = vadd.f32 %v64, %v66
    %v69 = vadd.f32 %v65, %v67
    %v70 = vld [vmem:[#allocation2] sm:$0xff]
    %v71 = vld [vmem:[#allocation2 + $0x8] sm:$0xff]
    %v72 = vadd.f32 %v68, 0.0
    %v73 = vadd.f32 %v69, 0.0
    %v74 = vadd.f32 %v70, %v72
    %v75 = vadd.f32 %v71, %v73
    %76 = vst [vmem:[#allocation2] sm:$0xff] %v74
    %77 = vst [vmem:[#allocation2 + $0x8] sm:$0xff] %v75
    // Predicated region
    $region22: #{tpu_custom_call.1} parent=1 // pred_check
      %p78 = pneg %p52
    $region23: #{tpu_custom_call.1} parent=1 // pred_check_branch
      %80 = sbr.rel (%p78) target = $region25
    $region24: #{tpu_custom_call.1} parent=1 // pred_region
      %v81 = vld [vmem:[#allocation2] sm:$0xff]
      %v82 = vld [vmem:[#allocation2 + $0x8] sm:$0xff]
      %v83 = vmul.f32 %v81, 0.00048828125
      %v84 = vmul.f32 %v82, 0.00048828125
      %v85 = vadd.f32 %v83, %v84
      %86 = vst [vmem:[#allocation8] sm:$0xff] %v85
    $region25: #{tpu_custom_call.1} parent=1 // pred_fallthru
      _
    // Predicated region
    $region26: #{tpu_custom_call.1} parent=1 // pred_check
      _
    $region27: #{tpu_custom_call.1} parent=1 // pred_check_branch
      %88 = sbr.rel (0) target = $region29
    $region28: #{tpu_custom_call.1} parent=1 // pred_region
      %s90 = ssub.s32 128, 128
      %91 = vsyncadd [#allocation5], %s90
      %s93 = sshll.u32 [#allocation8], 4
      %s94 = int_to_ptr.vmem [resolvable:$true] %s93
      %96 = dma.vmem_to_hbm [thread:$0]  %s94, 128, %s2, [#allocation5]
    $region29: #{tpu_custom_call.1} parent=1 // pred_fallthru
      _
    // Predicated region
    $region30: #{tpu_custom_call.1} parent=1 // pred_check
      _
    $region31: #{tpu_custom_call.1} parent=1 // pred_check_branch
      %98 = sbr.rel (0) target = $region33
    $region32: #{tpu_custom_call.1} parent=1 // pred_region
      %99 = dma.done [#allocation5], 128
    $region33: #{tpu_custom_call.1} parent=1 // pred_fallthru
      _
    %100 = vsyncpa [#allocation4], 1
    %101 = vsyncpa [#allocation7], 1
    %102 = vsyncpa [#allocation5], 1

</llo_original>
